<compile_context>
chip_gen: v6e
topology: v6e:2x2x1
jax: 0.10.0
libtpu: 0.0.40
codegen_flags: <defaults>
</compile_context>

<pallas_src>
import functools

import jax
import jax.numpy as jnp
from jax import lax
from jax.experimental import pallas as pl
from jax.experimental.pallas import tpu as pltpu


def _round_up(a, b):
    return ((a + b - 1) // b) * b


def _dropout_keep_scale(seed_i32, layer_base, shape, col0, n_cols):
    """Bernoulli(0.5) inverted-dropout scale (0.0 or 2.0) from a counter-based hash.

    Pure jnp/lax integer ops (works on TPU and in interpret mode).  The stream depends only on
    (seed, layer, global element index), so it is independent of tiling / grid order.
    """
    rows = lax.broadcasted_iota(jnp.int32, shape, 0)
    cols = lax.broadcasted_iota(jnp.int32, shape, 1) + col0
    idx = layer_base + rows * n_cols + cols
    # mix the seed in (0x9E3779B1 as int32), then murmur3 fmix32 finalizer in uint32
    x = (idx ^ (seed_i32 * jnp.int32(-1640531535))).astype(jnp.uint32)
    x = x ^ (x >> 16)
    x = x * jnp.uint32(0x85EBCA6B)
    x = x ^ (x >> 13)
    x = x * jnp.uint32(0xC2B2AE35)
    x = x ^ (x >> 16)
    keep = x >= jnp.uint32(0x80000000)  # high bit -> Bernoulli(0.5)
    return jnp.where(keep, jnp.float32(2.0), jnp.float32(0.0))  # 1/(1-p) folded in


def _dropout_dnn_kernel(seed_ref,               # scalar prefetch (SMEM), shape (1,)
                        xt_ref,                 # (d_in, tm)   x^T tile
                        w0_ref, b0_ref,         # (h0, d_in), (h0, 1)
                        w1_ref, b1_ref,         # (h1, h0),   (h1, 1)
                        w2_ref, b2_ref,         # (d_out, h1),(d_out, 1)
                        ot_ref,                 # (d_out, tm)  out^T tile
                        *, n_cols_total, training):
    tm = xt_ref.shape[1]
    col0 = pl.program_id(0) * tm
    seed = seed_ref[0]

    xt = xt_ref[...].astype(jnp.float32)

    # --- layer 0: Linear -> Tanh -> Dropout(p=0.5) ---
    h = jnp.dot(w0_ref[...], xt, preferred_element_type=jnp.float32) + b0_ref[...]
    h = jnp.tanh(h)
    if training:
        h = h * _dropout_keep_scale(seed, 0, h.shape, col0, n_cols_total)

    layer1_base = w0_ref.shape[0] * n_cols_total

    # --- layer 1: Linear -> Tanh -> Dropout(p=0.5) ---
    h = jnp.dot(w1_ref[...], h, preferred_element_type=jnp.float32) + b1_ref[...]
    h = jnp.tanh(h)
    if training:
        h = h * _dropout_keep_scale(seed, layer1_base, h.shape, col0, n_cols_total)

    # --- final layer: plain Linear ---
    out = jnp.dot(w2_ref[...], h, preferred_element_type=jnp.float32) + b2_ref[...]
    ot_ref[...] = out.astype(ot_ref.dtype)


def dropout_dnn_forward(x, params, seed, *, block_cols=1024, training=True):
    """x: [N, d_in] float32.  params: ((W0,b0),(W1,b1),(W2,b2)), W: [out, in] (PyTorch layout), b: [out]."""
    (w0, b0), (w1, b1), (w2, b2) = params
    N, d_in = x.shape
    h0 = w0.shape[0]
    h1 = w1.shape[0]
    d_out = w2.shape[0]

    # Batch on the 128-lane axis; one big tile (single grid step) when N is small.
    tm = min(block_cols, _round_up(N, 128))
    n_pad = _round_up(N, tm)
    grid = (n_pad // tm,)

    xt = jnp.zeros((d_in, n_pad), jnp.float32).at[:, :N].set(x.T)
    b0c = b0.reshape(h0, 1).astype(jnp.float32)
    b1c = b1.reshape(h1, 1).astype(jnp.float32)
    b2c = b2.reshape(d_out, 1).astype(jnp.float32)
    seed_arr = jnp.asarray([seed], dtype=jnp.int32)

    kernel = functools.partial(_dropout_dnn_kernel,
                               n_cols_total=n_pad, training=training)

    grid_spec = pltpu.PrefetchScalarGridSpec(
        num_scalar_prefetch=1,
        grid=grid,
        in_specs=[
            pl.BlockSpec((d_in, tm),  lambda i, s: (0, i)),   # x^T tile
            pl.BlockSpec((h0, d_in),  lambda i, s: (0, 0)),
            pl.BlockSpec((h0, 1),     lambda i, s: (0, 0)),
            pl.BlockSpec((h1, h0),    lambda i, s: (0, 0)),
            pl.BlockSpec((h1, 1),     lambda i, s: (0, 0)),
            pl.BlockSpec((d_out, h1), lambda i, s: (0, 0)),
            pl.BlockSpec((d_out, 1),  lambda i, s: (0, 0)),
        ],
        out_specs=pl.BlockSpec((d_out, tm), lambda i, s: (0, i)),
    )

    out_t = pl.pallas_call(
        kernel,
        out_shape=jax.ShapeDtypeStruct((d_out, n_pad), jnp.float32),
        grid_spec=grid_spec,
        compiler_params=pltpu.CompilerParams(
            dimension_semantics=("parallel",)),  # lets v7x shard column tiles across its 2 TCs
    )(seed_arr, xt, w0.astype(jnp.float32), b0c,
      w1.astype(jnp.float32), b1c, w2.astype(jnp.float32), b2c)

    return out_t[:, :N].T


def dropout_dnn_reference(x, params, seed, *, block_cols=1024, training=True):
    """Pure-JAX reference with the identical hash-based dropout mask (for verification)."""
    (w0, b0), (w1, b1), (w2, b2) = params
    N, d_in = x.shape
    tm = min(block_cols, _round_up(N, 128))
    n_pad = _round_up(N, tm)
    xt = jnp.zeros((d_in, n_pad), jnp.float32).at[:, :N].set(x.T)
    seed_i32 = jnp.int32(seed)
    hp = lax.Precision.HIGHEST

    h = jnp.tanh(jnp.dot(w0, xt, precision=hp) + b0.reshape(-1, 1))
    if training:
        h = h * _dropout_keep_scale(seed_i32, 0, h.shape, 0, n_pad)
    layer1_base = w0.shape[0] * n_pad
    h = jnp.tanh(jnp.dot(w1, h, precision=hp) + b1.reshape(-1, 1))
    if training:
        h = h * _dropout_keep_scale(seed_i32, layer1_base, h.shape, 0, n_pad)
    out = jnp.dot(w2, h, precision=hp) + b2.reshape(-1, 1)
    return out[:, :N].T


def init_params(key, layers):
    """nn.Linear-style init, PyTorch weight layout W: [out, in], b: [out]."""
    params = []
    for i in range(len(layers) - 1):
        fan_in, fan_out = layers[i], layers[i + 1]
        key, kw, kb = jax.random.split(key, 3)
        bound = float(fan_in) ** -0.5
        w = jax.random.uniform(kw, (fan_out, fan_in), jnp.float32, -bound, bound)
        b = jax.random.uniform(kb, (fan_out,), jnp.float32, -bound, bound)
        params.append((w, b))
    return tuple(params)


if __name__ == "__main__":
    # layers = [D_in, H, H, D_out] -> 2 hidden (tanh + dropout) layers + final linear,
    # matching Dropout_DNN(layers=[4, 32, 32, 1]).
    layers = [4, 32, 32, 1]
    N = 256  # batch of collocation points

    key = jax.random.PRNGKey(0)
    key, kx = jax.random.split(key)
    x = jax.random.normal(kx, (N, layers[0]), dtype=jnp.float32)
    params = init_params(key, layers)

    out = dropout_dnn_forward(x, params, seed=1234)
    out = jax.block_until_ready(out)

    assert out.shape == (N, layers[-1]), out.shape
    assert bool(jnp.all(jnp.isfinite(out)))

    # Verify against a pure-JAX reference that uses the identical dropout mask.
    # TODO(synk): bitwise parity with torch.nn.Dropout's RNG stream is not possible (different
    # generators); masks here are Bernoulli(0.5) with inverted-dropout scaling, same semantics.
    ref = dropout_dnn_reference(x, params, seed=1234)
    assert jnp.allclose(out, ref, rtol=1e-2, atol=1e-2), float(jnp.max(jnp.abs(out - ref)))

    print("KERNEL_OK")
</pallas_src>

<mosaic_0001>
module attributes {stable_mosaic.version = 11 : i64} {
  func.func @_dropout_dnn_kernel(%arg0: i32, %arg1: memref<1xi32, #tpu.memory_space<smem>>, %arg2: memref<4x256xf32, #tpu.memory_space<vmem>>, %arg3: memref<32x4xf32, #tpu.memory_space<vmem>>, %arg4: memref<32x1xf32, #tpu.memory_space<vmem>>, %arg5: memref<32x32xf32, #tpu.memory_space<vmem>>, %arg6: memref<32x1xf32, #tpu.memory_space<vmem>>, %arg7: memref<1x32xf32, #tpu.memory_space<vmem>>, %arg8: memref<1x1xf32, #tpu.memory_space<vmem>>, %arg9: memref<1x256xf32, #tpu.memory_space<vmem>>) attributes {dimension_semantics = [#tpu.dimension_semantics<parallel>], iteration_bounds = array<i64: 1>, scalar_prefetch = 1 : i64, scratch_operands = 0 : i64, tpu.core_type = #tpu.core_type<tc>, window_params = [{transform_indices = @transform_0, window_bounds = array<i64: 4, 256>}, {pipeline_mode = #tpu.pipeline_mode<synchronous>, transform_indices = @transform_1, window_bounds = array<i64: 32, 4>}, {pipeline_mode = #tpu.pipeline_mode<synchronous>, transform_indices = @transform_2, window_bounds = array<i64: 32, 1>}, {pipeline_mode = #tpu.pipeline_mode<synchronous>, transform_indices = @transform_3, window_bounds = array<i64: 32, 32>}, {pipeline_mode = #tpu.pipeline_mode<synchronous>, transform_indices = @transform_4, window_bounds = array<i64: 32, 1>}, {pipeline_mode = #tpu.pipeline_mode<synchronous>, transform_indices = @transform_5, window_bounds = array<i64: 1, 32>}, {pipeline_mode = #tpu.pipeline_mode<synchronous>, transform_indices = @transform_6, window_bounds = array<i64: 1, 1>}, {transform_indices = @transform_7, window_bounds = array<i64: 1, 256>}]} {
    %c256_i32 = arith.constant 256 : i32
    %0 = arith.muli %arg0, %c256_i32 : i32
    %c0 = arith.constant 0 : index
    %1 = memref.load %arg1[%c0] : memref<1xi32, #tpu.memory_space<smem>>
    %c0_0 = arith.constant 0 : index
    %c0_1 = arith.constant 0 : index
    %2 = vector.load %arg2[%c0_0, %c0_1] : memref<4x256xf32, #tpu.memory_space<vmem>>, vector<4x256xf32>
    %c0_2 = arith.constant 0 : index
    %c0_3 = arith.constant 0 : index
    %3 = vector.load %arg3[%c0_2, %c0_3] : memref<32x4xf32, #tpu.memory_space<vmem>>, vector<32x4xf32>
    %cst = arith.constant dense<0.000000e+00> : vector<32x256xf32>
    %4 = tpu.matmul %3, %2, %cst {dimension_numbers = #tpu.dot_dimension_numbers<[1], [0], [0], [1], [0, 0, 1, 1], [], []>} : vector<32x4xf32>, vector<4x256xf32>, vector<32x256xf32> -> vector<32x256xf32>
    %c0_4 = arith.constant 0 : index
    %c0_5 = arith.constant 0 : index
    %5 = vector.load %arg4[%c0_4, %c0_5] : memref<32x1xf32, #tpu.memory_space<vmem>>, vector<32x1xf32>
    %6 = vector.broadcast %5 : vector<32x1xf32> to vector<32x256xf32>
    %7 = arith.addf %4, %6 : vector<32x256xf32>
    %8 = math.tanh %7 : vector<32x256xf32>
    %9 = tpu.iota {dimensions = array<i32: 0>} : vector<32x256xi32>
    %10 = tpu.iota {dimensions = array<i32: 1>} : vector<32x256xi32>
    %11 = vector.broadcast %0 : i32 to vector<32x256xi32>
    %12 = arith.addi %10, %11 : vector<32x256xi32>
    %c256_i32_6 = arith.constant 256 : i32
    %13 = vector.broadcast %c256_i32_6 : i32 to vector<32x256xi32>
    %14 = arith.muli %9, %13 : vector<32x256xi32>
    %c0_i32 = arith.constant 0 : i32
    %15 = vector.broadcast %c0_i32 : i32 to vector<32x256xi32>
    %16 = arith.addi %15, %14 : vector<32x256xi32>
    %17 = arith.addi %16, %12 : vector<32x256xi32>
    %c-1640531535_i32 = arith.constant -1640531535 : i32
    %18 = arith.muli %1, %c-1640531535_i32 : i32
    %19 = vector.broadcast %18 : i32 to vector<32x256xi32>
    %20 = arith.xori %17, %19 : vector<32x256xi32>
    %c16_i32 = arith.constant 16 : i32
    %21 = vector.broadcast %c16_i32 : i32 to vector<32x256xi32>
    %22 = arith.shrui %20, %21 : vector<32x256xi32>
    %23 = arith.xori %20, %22 : vector<32x256xi32>
    %c-2048144789_i32 = arith.constant -2048144789 : i32
    %24 = vector.broadcast %c-2048144789_i32 : i32 to vector<32x256xi32>
    %25 = arith.muli %23, %24 : vector<32x256xi32>
    %c13_i32 = arith.constant 13 : i32
    %26 = vector.broadcast %c13_i32 : i32 to vector<32x256xi32>
    %27 = arith.shrui %25, %26 : vector<32x256xi32>
    %28 = arith.xori %25, %27 : vector<32x256xi32>
    %c-1028477387_i32 = arith.constant -1028477387 : i32
    %29 = vector.broadcast %c-1028477387_i32 : i32 to vector<32x256xi32>
    %30 = arith.muli %28, %29 : vector<32x256xi32>
    %c16_i32_7 = arith.constant 16 : i32
    %31 = vector.broadcast %c16_i32_7 : i32 to vector<32x256xi32>
    %32 = arith.shrui %30, %31 : vector<32x256xi32>
    %33 = arith.xori %30, %32 : vector<32x256xi32>
    %c-2147483648_i32 = arith.constant -2147483648 : i32
    %34 = vector.broadcast %c-2147483648_i32 : i32 to vector<32x256xi32>
    %35 = arith.cmpi uge, %33, %34 : vector<32x256xi32>
    %cst_8 = arith.constant 2.000000e+00 : f32
    %cst_9 = arith.constant 0.000000e+00 : f32
    %36 = vector.broadcast %cst_8 : f32 to vector<32x256xf32>
    %37 = vector.broadcast %cst_9 : f32 to vector<32x256xf32>
    %38 = arith.select %35, %36, %37 : vector<32x256xi1>, vector<32x256xf32>
    %39 = arith.mulf %8, %38 : vector<32x256xf32>
    %c0_10 = arith.constant 0 : index
    %c0_11 = arith.constant 0 : index
    %40 = vector.load %arg5[%c0_10, %c0_11] : memref<32x32xf32, #tpu.memory_space<vmem>>, vector<32x32xf32>
    %cst_12 = arith.constant dense<0.000000e+00> : vector<32x256xf32>
    %41 = tpu.matmul %40, %39, %cst_12 {dimension_numbers = #tpu.dot_dimension_numbers<[1], [0], [0], [1], [0, 0, 1, 1], [], []>} : vector<32x32xf32>, vector<32x256xf32>, vector<32x256xf32> -> vector<32x256xf32>
    %c0_13 = arith.constant 0 : index
    %c0_14 = arith.constant 0 : index
    %42 = vector.load %arg6[%c0_13, %c0_14] : memref<32x1xf32, #tpu.memory_space<vmem>>, vector<32x1xf32>
    %43 = vector.broadcast %42 : vector<32x1xf32> to vector<32x256xf32>
    %44 = arith.addf %41, %43 : vector<32x256xf32>
    %45 = math.tanh %44 : vector<32x256xf32>
    %46 = tpu.iota {dimensions = array<i32: 0>} : vector<32x256xi32>
    %47 = tpu.iota {dimensions = array<i32: 1>} : vector<32x256xi32>
    %48 = vector.broadcast %0 : i32 to vector<32x256xi32>
    %49 = arith.addi %47, %48 : vector<32x256xi32>
    %c256_i32_15 = arith.constant 256 : i32
    %50 = vector.broadcast %c256_i32_15 : i32 to vector<32x256xi32>
    %51 = arith.muli %46, %50 : vector<32x256xi32>
    %c8192_i32 = arith.constant 8192 : i32
    %52 = vector.broadcast %c8192_i32 : i32 to vector<32x256xi32>
    %53 = arith.addi %52, %51 : vector<32x256xi32>
    %54 = arith.addi %53, %49 : vector<32x256xi32>
    %c-1640531535_i32_16 = arith.constant -1640531535 : i32
    %55 = arith.muli %1, %c-1640531535_i32_16 : i32
    %56 = vector.broadcast %55 : i32 to vector<32x256xi32>
    %57 = arith.xori %54, %56 : vector<32x256xi32>
    %c16_i32_17 = arith.constant 16 : i32
    %58 = vector.broadcast %c16_i32_17 : i32 to vector<32x256xi32>
    %59 = arith.shrui %57, %58 : vector<32x256xi32>
    %60 = arith.xori %57, %59 : vector<32x256xi32>
    %c-2048144789_i32_18 = arith.constant -2048144789 : i32
    %61 = vector.broadcast %c-2048144789_i32_18 : i32 to vector<32x256xi32>
    %62 = arith.muli %60, %61 : vector<32x256xi32>
    %c13_i32_19 = arith.constant 13 : i32
    %63 = vector.broadcast %c13_i32_19 : i32 to vector<32x256xi32>
    %64 = arith.shrui %62, %63 : vector<32x256xi32>
    %65 = arith.xori %62, %64 : vector<32x256xi32>
    %c-1028477387_i32_20 = arith.constant -1028477387 : i32
    %66 = vector.broadcast %c-1028477387_i32_20 : i32 to vector<32x256xi32>
    %67 = arith.muli %65, %66 : vector<32x256xi32>
    %c16_i32_21 = arith.constant 16 : i32
    %68 = vector.broadcast %c16_i32_21 : i32 to vector<32x256xi32>
    %69 = arith.shrui %67, %68 : vector<32x256xi32>
    %70 = arith.xori %67, %69 : vector<32x256xi32>
    %c-2147483648_i32_22 = arith.constant -2147483648 : i32
    %71 = vector.broadcast %c-2147483648_i32_22 : i32 to vector<32x256xi32>
    %72 = arith.cmpi uge, %70, %71 : vector<32x256xi32>
    %cst_23 = arith.constant 2.000000e+00 : f32
    %cst_24 = arith.constant 0.000000e+00 : f32
    %73 = vector.broadcast %cst_23 : f32 to vector<32x256xf32>
    %74 = vector.broadcast %cst_24 : f32 to vector<32x256xf32>
    %75 = arith.select %72, %73, %74 : vector<32x256xi1>, vector<32x256xf32>
    %76 = arith.mulf %45, %75 : vector<32x256xf32>
    %c0_25 = arith.constant 0 : index
    %c0_26 = arith.constant 0 : index
    %77 = vector.load %arg7[%c0_25, %c0_26] : memref<1x32xf32, #tpu.memory_space<vmem>>, vector<1x32xf32>
    %cst_27 = arith.constant dense<0.000000e+00> : vector<1x256xf32>
    %78 = tpu.matmul %77, %76, %cst_27 {dimension_numbers = #tpu.dot_dimension_numbers<[1], [0], [0], [1], [0, 0, 1, 1], [], []>} : vector<1x32xf32>, vector<32x256xf32>, vector<1x256xf32> -> vector<1x256xf32>
    %c0_28 = arith.constant 0 : index
    %c0_29 = arith.constant 0 : index
    %79 = vector.load %arg8[%c0_28, %c0_29] : memref<1x1xf32, #tpu.memory_space<vmem>>, vector<1x1xf32>
    %80 = vector.broadcast %79 : vector<1x1xf32> to vector<1x256xf32>
    %81 = arith.addf %78, %80 : vector<1x256xf32>
    %c0_30 = arith.constant 0 : index
    %c0_31 = arith.constant 0 : index
    %82 = vector.load %arg9[%c0_30, %c0_31] : memref<1x256xf32, #tpu.memory_space<vmem>>, vector<1x256xf32>
    tpu.vector_store %arg9[%c0_30, %c0_31], %81 {strides = array<i32>} : memref<1x256xf32, #tpu.memory_space<vmem>>, vector<1x256xf32>,
    return
  }
  func.func @transform_0(%arg0: i32, %arg1: memref<1xi32, #tpu.memory_space<smem>>) -> (i32, i32) {
    %c0_i32 = arith.constant 0 : i32
    %c0_i32_0 = arith.constant 0 : i32
    return %c0_i32, %arg0 : i32, i32
  }
  func.func @transform_1(%arg0: i32, %arg1: memref<1xi32, #tpu.memory_space<smem>>) -> (i32, i32) {
    %c0_i32 = arith.constant 0 : i32
    %c0_i32_0 = arith.constant 0 : i32
    %c0_i32_1 = arith.constant 0 : i32
    return %c0_i32, %c0_i32_0 : i32, i32
  }
  func.func @transform_2(%arg0: i32, %arg1: memref<1xi32, #tpu.memory_space<smem>>) -> (i32, i32) {
    %c0_i32 = arith.constant 0 : i32
    %c0_i32_0 = arith.constant 0 : i32
    %c0_i32_1 = arith.constant 0 : i32
    return %c0_i32, %c0_i32_0 : i32, i32
  }
  func.func @transform_3(%arg0: i32, %arg1: memref<1xi32, #tpu.memory_space<smem>>) -> (i32, i32) {
    %c0_i32 = arith.constant 0 : i32
    %c0_i32_0 = arith.constant 0 : i32
    %c0_i32_1 = arith.constant 0 : i32
    return %c0_i32, %c0_i32_0 : i32, i32
  }
  func.func @transform_4(%arg0: i32, %arg1: memref<1xi32, #tpu.memory_space<smem>>) -> (i32, i32) {
    %c0_i32 = arith.constant 0 : i32
    %c0_i32_0 = arith.constant 0 : i32
    %c0_i32_1 = arith.constant 0 : i32
    return %c0_i32, %c0_i32_0 : i32, i32
  }
  func.func @transform_5(%arg0: i32, %arg1: memref<1xi32, #tpu.memory_space<smem>>) -> (i32, i32) {
    %c0_i32 = arith.constant 0 : i32
    %c0_i32_0 = arith.constant 0 : i32
    %c0_i32_1 = arith.constant 0 : i32
    return %c0_i32, %c0_i32_0 : i32, i32
  }
  func.func @transform_6(%arg0: i32, %arg1: memref<1xi32, #tpu.memory_space<smem>>) -> (i32, i32) {
    %c0_i32 = arith.constant 0 : i32
    %c0_i32_0 = arith.constant 0 : i32
    %c0_i32_1 = arith.constant 0 : i32
    return %c0_i32, %c0_i32_0 : i32, i32
  }
  func.func @transform_7(%arg0: i32, %arg1: memref<1xi32, #tpu.memory_space<smem>>) -> (i32, i32) {
    %c0_i32 = arith.constant 0 : i32
    %c0_i32_0 = arith.constant 0 : i32
    return %c0_i32, %arg0 : i32, i32
  }
}

</mosaic_0001>

<llo_original>
// kernel: tpu_custom_call.1
$region0: #{tpu_custom_call.1}
  #allocation0 [shape = 'u32[]', space=smem, size = 0x4, offset = 0x4, fixed_abs, tag = 'smem constant byte address 0x4 - core index']
  #allocation1 [shape = 'u32[144,128]{1,0:T(1,128)}', space=vmem, size = 0x12000, scoped, tag = 'internal scratch']
  #allocation2 [shape = 's32[1]{0}', space=sflag, size = 0x4, scoped, tag = 'scoped memory for tpu_custom_call.1']
  #allocation3 [shape = 's32[1]{0:T(128)S(6)}', space=smem, size = 0x200, scoped, tag = 'prefetched SMEM operand 0']
  #allocation4 [shape = 'f32[1,1]{1,0:T(1,128)S(1)}', space=vmem, size = 0x200, scoped, tag = 'scoped memory for tpu_custom_call.1']
  %s0 = inlined_call_operand.<no memory space> [shape: s32[1], index: 0, kind: input, shape index: {}]
  %s1 = inlined_call_operand.vmem [shape: f32[4,256], index: 1, kind: input, shape index: {}]
  %s2 = inlined_call_operand.vmem [shape: f32[32,4], index: 2, kind: input, shape index: {}]
  %s3 = inlined_call_operand.vmem [shape: f32[32,1], index: 3, kind: input, shape index: {}]
  %s4 = inlined_call_operand.vmem [shape: f32[32,32], index: 4, kind: input, shape index: {}]
  %s5 = inlined_call_operand.vmem [shape: f32[32,1], index: 5, kind: input, shape index: {}]
  %s6 = inlined_call_operand.vmem [shape: f32[1,32], index: 6, kind: input, shape index: {}]
  %s7 = inlined_call_operand.<no memory space> [shape: f32[1,1], index: 7, kind: input, shape index: {}]
  %s8 = inlined_call_operand.hbm [shape: f32[1,256], index: 8, kind: output, shape index: {}]
  %s9 = sld [smem:[#allocation0]]
  $region38: #{tpu_custom_call.1} parent=0
    _
  %s11 = ssub.s32 1, %s9
  %s12 = scalar_select 0, %s11, %s9
  %13 = sst [smem:[#allocation3]] %s0
  %v14 = vstv %s7
  %15 = vst [vmem:[#allocation4] sm:$0x1] %v14
  $region1: #{tpu_custom_call.1} parent=0
    #allocation5 [shape = 'u8[1024]{0}', space=vmem, size = 0x400, scoped, tag = 'output window, operand 0, single buffered']
    #allocation6 [shape = 's32[1]{0}', space=sflag, size = 0x4, scoped, tag = 'scoped memory for tpu_custom_call.1']
    %16 = vsyncpa [#allocation6], 0
    // Predicated region
    $region2: #{tpu_custom_call.1} parent=1 // pred_check
      _
    $region3: #{tpu_custom_call.1} parent=1 // pred_check_branch
      %18 = sbr.rel (0) target = $region5
    $region4: #{tpu_custom_call.1} parent=1 // pred_region
      _
    $region5: #{tpu_custom_call.1} parent=1 // pred_fallthru
      _
    // Predicated region
    $region6: #{tpu_custom_call.1} parent=1 // pred_check
      _
    $region7: #{tpu_custom_call.1} parent=1 // pred_check_branch
      %20 = sbr.rel (0) target = $region9
    $region8: #{tpu_custom_call.1} parent=1 // pred_region
      _
    $region9: #{tpu_custom_call.1} parent=1 // pred_fallthru
      _
    // Predicated region
    $region10: #{tpu_custom_call.1} parent=1 // pred_check
      _
    $region11: #{tpu_custom_call.1} parent=1 // pred_check_branch
      %22 = sbr.rel (0) target = $region13
    $region12: #{tpu_custom_call.1} parent=1 // pred_region
      _
    $region13: #{tpu_custom_call.1} parent=1 // pred_fallthru
      _
    // Predicated region
    $region14: #{tpu_custom_call.1} parent=1 // pred_check
      _
    $region15: #{tpu_custom_call.1} parent=1 // pred_check_branch
      %24 = sbr.rel (0) target = $region17
    $region16: #{tpu_custom_call.1} parent=1 // pred_region
      _
    $region17: #{tpu_custom_call.1} parent=1 // pred_fallthru
      _
    // Predicated region
    $region18: #{tpu_custom_call.1} parent=1 // pred_check
      _
    $region19: #{tpu_custom_call.1} parent=1 // pred_check_branch
      %26 = sbr.rel (0) target = $region21
    $region20: #{tpu_custom_call.1} parent=1 // pred_region
      _
    $region21: #{tpu_custom_call.1} parent=1 // pred_fallthru
      _
    // Predicated region
    $region22: #{tpu_custom_call.1} parent=1 // pred_check
      _
    $region23: #{tpu_custom_call.1} parent=1 // pred_check_branch
      %28 = sbr.rel (0) target = $region25
    $region24: #{tpu_custom_call.1} parent=1 // pred_region
      _
    $region25: #{tpu_custom_call.1} parent=1 // pred_fallthru
      _
    // Predicated region
    $region26: #{tpu_custom_call.1} parent=1 // pred_check
      _
    $region27: #{tpu_custom_call.1} parent=1 // pred_check_branch
      %30 = sbr.rel (0) target = $region29
    $region28: #{tpu_custom_call.1} parent=1 // pred_region
      _
    $region29: #{tpu_custom_call.1} parent=1 // pred_fallthru
      _
    %s31 = smul.u32 0, 256
    %s32 = sld [smem:[#allocation3]]
    %v33 = vld [vmem:[%s1] sm:$0xff]
    %v34 = vld [vmem:[%s2] sm:$0xff]
    %v35 = vld [vmem:[%s2 + $0x8] sm:$0xff]
    %v36 = vld [vmem:[%s2 + $0x10] sm:$0xff]
    %v37 = vld [vmem:[%s2 + $0x18] sm:$0xff]
    %v38 = vld [vmem:[%s3] sm:$0xff]
    %v39 = vld [vmem:[%s3 + $0x8] sm:$0xff]
    %v40 = vld [vmem:[%s3 + $0x10] sm:$0xff]
    %v41 = vld [vmem:[%s3 + $0x18] sm:$0xff]
    %43 = vset.pattern.permute.xlu0 0
    %44 = vperm.xlu0 %43, %v38
    %v45 = vpop.permute.xlu0 %44
    %48 = vset.pattern.permute.xlu0 0
    %49 = vperm.xlu0 %48, %v39
    %v50 = vpop.permute.xlu0 %49
    %53 = vset.pattern.permute.xlu0 0
    %54 = vperm.xlu0 %53, %v40
    %v55 = vpop.permute.xlu0 %54
    %58 = vset.pattern.permute.xlu0 0
    %59 = vperm.xlu0 %58, %v41
    %v60 = vpop.permute.xlu0 %59
    %v63 = vcombine.high %v33, %v33
    %vm64 = vcmask 31744
    %v66 = vsel %vm64, %v34, 0
    %v69 = vsel %vm64, %v35, 0
    %v72 = vsel %vm64, %v36, 0
    %v75 = vsel %vm64, %v37, 0
    %vm77 = vcmask 1043456
    %v78 = vsel %vm77, %v33, 0
    %v80 = vsel %vm77, %v63, 0
    %82 = vmatprep.subr.mxu0 0.0
    %83 = vmatpush1.msra.mxu0 0.0
    %84 = vmatprep.subr.mxu0 0.0
    %85 = vmatpush1.msra.mxu0 0.0
    %86 = vmatprep.subr.mxu0 0.0
    %87 = vmatpush1.msra.mxu0 0.0
    %88 = vmatprep.subr.mxu0 0.0
    %89 = vmatpush1.msra.mxu0 0.0
    %90 = vmatprep.subr.mxu0 0.0
    %91 = vmatpush1.msra.mxu0 0.0
    %92 = vmatprep.subr.mxu0 0.0
    %93 = vmatpush1.msra.mxu0 0.0
    %94 = vmatprep.subr.mxu0 0.0
    %95 = vmatpush1.msra.mxu0 0.0
    %96 = vmatprep.subr.mxu0 0.0
    %97 = vmatpush1.msra.mxu0 0.0
    %98 = vmatprep.subr.mxu0 0.0
    %99 = vmatpush1.msra.mxu0 0.0
    %100 = vmatprep.subr.mxu0 0.0
    %101 = vmatpush1.msra.mxu0 0.0
    %102 = vmatprep.subr.mxu0 0.0
    %103 = vmatpush1.msra.mxu0 0.0
    %104 = vmatprep.subr.mxu0 0.0
    %105 = vmatpush1.msra.mxu0 0.0
    %106 = vmatprep.subr.mxu0 0.0
    %107 = vmatpush1.msra.mxu0 0.0
    %108 = vmatprep.subr.mxu0 0.0
    %109 = vmatpush1.msra.mxu0 0.0
    %110 = vmatprep.subr.mxu0 0.0
    %111 = vmatpush1.msra.mxu0 0.0
    %112 = vmatprep.subr.mxu0 %v80
    %113 = vmatpush1.msra.mxu0 %v78
    %114 = vmatprep.subr.mxu0 0.0
    %115 = vmatpush2.msra.mxu0 0.0
    %116 = vmatprep.subr.mxu0 0.0
    %117 = vmatpush2.msra.mxu0 0.0
    %118 = vmatprep.subr.mxu0 0.0
    %119 = vmatpush2.msra.mxu0 0.0
    %120 = vmatprep.subr.mxu0 0.0
    %121 = vmatpush2.msra.mxu0 0.0
    %122 = vmatprep.subr.mxu0 0.0
    %123 = vmatpush2.msra.mxu0 0.0
    %124 = vmatprep.subr.mxu0 0.0
    %125 = vmatpush2.msra.mxu0 0.0
    %126 = vmatprep.subr.mxu0 0.0
    %127 = vmatpush2.msra.mxu0 0.0
    %128 = vmatprep.subr.mxu0 0.0
    %129 = vmatpush2.msra.mxu0 0.0
    %130 = vmatprep.subr.mxu0 0.0
    %131 = vmatpush2.msra.mxu0 0.0
    %132 = vmatprep.subr.mxu0 0.0
    %133 = vmatpush2.msra.mxu0 0.0
    %134 = vmatprep.subr.mxu0 0.0
    %135 = vmatpush2.msra.mxu0 0.0
    %136 = vmatprep.subr.mxu0 0.0
    %137 = vmatpush2.msra.mxu0 0.0
    %138 = vmatprep.subr.mxu0 0.0
    %139 = vmatpush2.msra.mxu0 0.0
    %140 = vmatprep.subr.mxu0 0.0
    %141 = vmatpush2.msra.mxu0 0.0
    %142 = vmatprep.subr.mxu0 0.0
    %143 = vmatpush2.msra.mxu0 0.0
    %144 = vmatprep.subr.mxu0 0.0
    %145 = vmatpush2.msra.mxu0 0.0
    %146 = vmatprep.mubr.f32.mxu0 0.0
    %147 = vmatmul.mubr.f32.gmra.mxu0 %v66
    %v148 = vpop.f32.mrf.mxu0
    %v149 = vadd.f32 %v45, %v148
    %v150 = vpop.f32.mrf.mxu0
    %v151 = vadd.f32 %v45, %v150
    %152 = vmatprep.mubr.f32.mxu0 0.0
    %153 = vmatmul.mubr.f32.gmra.mxu0 %v69
    %v154 = vpop.f32.mrf.mxu0
    %v155 = vadd.f32 %v50, %v154
    %v156 = vpop.f32.mrf.mxu0
    %v157 = vadd.f32 %v50, %v156
    %158 = vmatprep.mubr.f32.mxu0 0.0
    %159 = vmatmul.mubr.f32.gmra.mxu0 %v72
    %v160 = vpop.f32.mrf.mxu0
    %v161 = vadd.f32 %v55, %v160
    %v162 = vpop.f32.mrf.mxu0
    %v163 = vadd.f32 %v55, %v162
    %164 = vmatprep.mubr.f32.mxu0 0.0
    %165 = vmatmul.mubr.f32.gmra.mxu0 %v75
    %v166 = vpop.f32.mrf.mxu0
    %v167 = vadd.f32 %v60, %v166
    %v168 = vpop.f32.mrf.mxu0
    %v169 = vadd.f32 %v60, %v168
    %170 = vdwg.mxu0
    %v171 = vtanh.pop %v149
    %v172 = vtanh.pop %v151
    %v173 = vtanh.pop %v155
    %v174 = vtanh.pop %v157
    %v175 = vtanh.pop %v161
    %v176 = vtanh.pop %v163
    %v177 = vtanh.pop %v167
    %v178 = vtanh.pop %v169
    %v179 = vlaneseq
    %v180 = vshrl.u32 %v179, 7
    %v181 = vadd.s32 %v180, 8
    %v182 = vadd.s32 %v180, 16
    %v183 = vadd.s32 %v180, 24
    %v184 = vlaneseq
    %v185 = vand.u32 %v184, 127
    %v186 = vadd.s32 %v185, 128
    %v187 = vstv %s31
    %v188 = vadd.s32 %v185, %v187
    %v189 = vadd.s32 %v186, %v187
    %v190 = vmul.u32 %v180, 256
    %v191 = vmul.u32 %v181, 256
    %v192 = vmul.u32 %v182, 256
    %v193 = vmul.u32 %v183, 256
    %v194 = vadd.s32 %v190, %v188
    %v195 = vadd.s32 %v190, %v189
    %v196 = vadd.s32 %v191, %v188
    %v197 = vadd.s32 %v191, %v189
    %v198 = vadd.s32 %v192, %v188
    %v199 = vadd.s32 %v192, %v189
    %v200 = vadd.s32 %v193, %v188
    %v201 = vadd.s32 %v193, %v189
    %s202 = smul.u32 %s32, 2654435761
    %v203 = vstv %s202
    %v204 = vxor.u32 %v194, %v203
    %v205 = vxor.u32 %v195, %v203
    %v206 = vxor.u32 %v196, %v203
    %v207 = vxor.u32 %v197, %v203
    %v208 = vxor.u32 %v198, %v203
    %v209 = vxor.u32 %v199, %v203
    %v210 = vxor.u32 %v200, %v203
    %v211 = vxor.u32 %v201, %v203
    %v212 = vshrl.u32 %v204, 16
    %v213 = vshrl.u32 %v205, 16
    %v214 = vshrl.u32 %v206, 16
    %v215 = vshrl.u32 %v207, 16
    %v216 = vshrl.u32 %v208, 16
    %v217 = vshrl.u32 %v209, 16
    %v218 = vshrl.u32 %v210, 16
    %v219 = vshrl.u32 %v211, 16
    %v220 = vxor.u32 %v204, %v212
    %v221 = vxor.u32 %v205, %v213
    %v222 = vxor.u32 %v206, %v214
    %v223 = vxor.u32 %v207, %v215
    %v224 = vxor.u32 %v208, %v216
    %v225 = vxor.u32 %v209, %v217
    %v226 = vxor.u32 %v210, %v218
    %v227 = vxor.u32 %v211, %v219
    %v228 = vmul.u32 %v220, 2246822507
    %v229 = vmul.u32 %v221, 2246822507
    %v230 = vmul.u32 %v222, 2246822507
    %v231 = vmul.u32 %v223, 2246822507
    %v232 = vmul.u32 %v224, 2246822507
    %v233 = vmul.u32 %v225, 2246822507
    %v234 = vmul.u32 %v226, 2246822507
    %v235 = vmul.u32 %v227, 2246822507
    %v236 = vshrl.u32 %v228, 13
    %v237 = vshrl.u32 %v229, 13
    %v238 = vshrl.u32 %v230, 13
    %v239 = vshrl.u32 %v231, 13
    %v240 = vshrl.u32 %v232, 13
    %v241 = vshrl.u32 %v233, 13
    %v242 = vshrl.u32 %v234, 13
    %v243 = vshrl.u32 %v235, 13
    %v244 = vxor.u32 %v228, %v236
    %v245 = vxor.u32 %v229, %v237
    %v246 = vxor.u32 %v230, %v238
    %v247 = vxor.u32 %v231, %v239
    %v248 = vxor.u32 %v232, %v240
    %v249 = vxor.u32 %v233, %v241
    %v250 = vxor.u32 %v234, %v242
    %v251 = vxor.u32 %v235, %v243
    %v252 = vmul.u32 %v244, 3266489909
    %v253 = vmul.u32 %v245, 3266489909
    %v254 = vmul.u32 %v246, 3266489909
    %v255 = vmul.u32 %v247, 3266489909
    %v256 = vmul.u32 %v248, 3266489909
    %v257 = vmul.u32 %v249, 3266489909
    %v258 = vmul.u32 %v250, 3266489909
    %v259 = vmul.u32 %v251, 3266489909
    %v260 = vshrl.u32 %v252, 16
    %v261 = vshrl.u32 %v253, 16
    %v262 = vshrl.u32 %v254, 16
    %v263 = vshrl.u32 %v255, 16
    %v264 = vshrl.u32 %v256, 16
    %v265 = vshrl.u32 %v257, 16
    %v266 = vshrl.u32 %v258, 16
    %v267 = vshrl.u32 %v259, 16
    %v268 = vxor.u32 %v252, %v260
    %v269 = vxor.u32 %v253, %v261
    %v270 = vxor.u32 %v254, %v262
    %v271 = vxor.u32 %v255, %v263
    %v272 = vxor.u32 %v256, %v264
    %v273 = vxor.u32 %v257, %v265
    %v274 = vxor.u32 %v258, %v266
    %v275 = vxor.u32 %v259, %v267
    %vm276 = vcmp.ge.u32.totalorder %v268, 2147483648
    %vm277 = vcmp.ge.u32.totalorder %v269, 2147483648
    %vm278 = vcmp.ge.u32.totalorder %v270, 2147483648
    %vm279 = vcmp.ge.u32.totalorder %v271, 2147483648
    %vm280 = vcmp.ge.u32.totalorder %v272, 2147483648
    %vm281 = vcmp.ge.u32.totalorder %v273, 2147483648
    %vm282 = vcmp.ge.u32.totalorder %v274, 2147483648
    %vm283 = vcmp.ge.u32.totalorder %v275, 2147483648
    %v284 = vsel %vm276, 2.0, 0.0
    %v285 = vsel %vm277, 2.0, 0.0
    %v286 = vsel %vm278, 2.0, 0.0
    %v287 = vsel %vm279, 2.0, 0.0
    %v288 = vsel %vm280, 2.0, 0.0
    %v289 = vsel %vm281, 2.0, 0.0
    %v290 = vsel %vm282, 2.0, 0.0
    %v291 = vsel %vm283, 2.0, 0.0
    %v292 = vmul.f32 %v171, %v284
    %v293 = vmul.f32 %v172, %v285
    %v294 = vmul.f32 %v173, %v286
    %v295 = vmul.f32 %v174, %v287
    %v296 = vmul.f32 %v175, %v288
    %v297 = vmul.f32 %v176, %v289
    %v298 = vmul.f32 %v177, %v290
    %v299 = vmul.f32 %v178, %v291
    %v300 = vld [vmem:[%s4] sm:$0xff]
    %v301 = vld [vmem:[%s4 + $0x8] sm:$0xff]
    %v302 = vld [vmem:[%s4 + $0x10] sm:$0xff]
    %v303 = vld [vmem:[%s4 + $0x18] sm:$0xff]
    %v304 = vld [vmem:[%s5] sm:$0xff]
    %v305 = vld [vmem:[%s5 + $0x8] sm:$0xff]
    %v306 = vld [vmem:[%s5 + $0x10] sm:$0xff]
    %v307 = vld [vmem:[%s5 + $0x18] sm:$0xff]
    %309 = vset.pattern.permute.xlu0 0
    %310 = vperm.xlu0 %309, %v304
    %v311 = vpop.permute.xlu0 %310
    %314 = vset.pattern.permute.xlu0 0
    %315 = vperm.xlu0 %314, %v305
    %v316 = vpop.permute.xlu0 %315
    %319 = vset.pattern.permute.xlu0 0
    %320 = vperm.xlu0 %319, %v306
    %v321 = vpop.permute.xlu0 %320
    %324 = vset.pattern.permute.xlu0 0
    %325 = vperm.xlu0 %324, %v307
    %v326 = vpop.permute.xlu0 %325
    %vm328 = vcmask 261120
    %v330 = vsel %vm328, %v300, 0
    %v333 = vsel %vm328, %v301, 0
    %v336 = vsel %vm328, %v302, 0
    %v339 = vsel %vm328, %v303, 0
    %341 = vmatprep.subr.mxu0 0.0
    %342 = vmatpush1.msra.mxu0 0.0
    %343 = vmatprep.subr.mxu0 0.0
    %344 = vmatpush1.msra.mxu0 0.0
    %345 = vmatprep.subr.mxu0 0.0
    %346 = vmatpush1.msra.mxu0 0.0
    %347 = vmatprep.subr.mxu0 0.0
    %348 = vmatpush1.msra.mxu0 0.0
    %349 = vmatprep.subr.mxu0 0.0
    %350 = vmatpush1.msra.mxu0 0.0
    %351 = vmatprep.subr.mxu0 0.0
    %352 = vmatpush1.msra.mxu0 0.0
    %353 = vmatprep.subr.mxu0 0.0
    %354 = vmatpush1.msra.mxu0 0.0
    %355 = vmatprep.subr.mxu0 0.0
    %356 = vmatpush1.msra.mxu0 0.0
    %357 = vmatprep.subr.mxu0 0.0
    %358 = vmatpush1.msra.mxu0 0.0
    %359 = vmatprep.subr.mxu0 0.0
    %360 = vmatpush1.msra.mxu0 0.0
    %361 = vmatprep.subr.mxu0 0.0
    %362 = vmatpush1.msra.mxu0 0.0
    %363 = vmatprep.subr.mxu0 0.0
    %364 = vmatpush1.msra.mxu0 0.0
    %365 = vmatprep.subr.mxu0 %v299
    %366 = vmatpush1.msra.mxu0 %v298
    %367 = vmatprep.subr.mxu0 %v297
    %368 = vmatpush1.msra.mxu0 %v296
    %369 = vmatprep.subr.mxu0 %v295
    %370 = vmatpush1.msra.mxu0 %v294
    %371 = vmatprep.subr.mxu0 %v293
    %372 = vmatpush1.msra.mxu0 %v292
    %373 = vmatprep.subr.mxu0 0.0
    %374 = vmatpush2.msra.mxu0 0.0
    %375 = vmatprep.subr.mxu0 0.0
    %376 = vmatpush2.msra.mxu0 0.0
    %377 = vmatprep.subr.mxu0 0.0
    %378 = vmatpush2.msra.mxu0 0.0
    %379 = vmatprep.subr.mxu0 0.0
    %380 = vmatpush2.msra.mxu0 0.0
    %381 = vmatprep.subr.mxu0 0.0
    %382 = vmatpush2.msra.mxu0 0.0
    %383 = vmatprep.subr.mxu0 0.0
    %384 = vmatpush2.msra.mxu0 0.0
    %385 = vmatprep.subr.mxu0 0.0
    %386 = vmatpush2.msra.mxu0 0.0
    %387 = vmatprep.subr.mxu0 0.0
    %388 = vmatpush2.msra.mxu0 0.0
    %389 = vmatprep.subr.mxu0 0.0
    %390 = vmatpush2.msra.mxu0 0.0
    %391 = vmatprep.subr.mxu0 0.0
    %392 = vmatpush2.msra.mxu0 0.0
    %393 = vmatprep.subr.mxu0 0.0
    %394 = vmatpush2.msra.mxu0 0.0
    %395 = vmatprep.subr.mxu0 0.0
    %396 = vmatpush2.msra.mxu0 0.0
    %397 = vmatprep.subr.mxu0 0.0
    %398 = vmatpush2.msra.mxu0 0.0
    %399 = vmatprep.subr.mxu0 0.0
    %400 = vmatpush2.msra.mxu0 0.0
    %401 = vmatprep.subr.mxu0 0.0
    %402 = vmatpush2.msra.mxu0 0.0
    %403 = vmatprep.subr.mxu0 0.0
    %404 = vmatpush2.msra.mxu0 0.0
    %405 = vmatprep.mubr.f32.mxu0 0.0
    %406 = vmatmul.mubr.f32.gmra.mxu0 %v330
    %v407 = vpop.f32.mrf.mxu0
    %v408 = vadd.f32 %v311, %v407
    %v409 = vpop.f32.mrf.mxu0
    %v410 = vadd.f32 %v311, %v409
    %411 = vmatprep.mubr.f32.mxu0 0.0
    %412 = vmatmul.mubr.f32.gmra.mxu0 %v333
    %v413 = vpop.f32.mrf.mxu0
    %v414 = vadd.f32 %v316, %v413
    %v415 = vpop.f32.mrf.mxu0
    %v416 = vadd.f32 %v316, %v415
    %417 = vmatprep.mubr.f32.mxu0 0.0
    %418 = vmatmul.mubr.f32.gmra.mxu0 %v336
    %v419 = vpop.f32.mrf.mxu0
    %v420 = vadd.f32 %v321, %v419
    %v421 = vpop.f32.mrf.mxu0
    %v422 = vadd.f32 %v321, %v421
    %423 = vmatprep.mubr.f32.mxu0 0.0
    %424 = vmatmul.mubr.f32.gmra.mxu0 %v339
    %v425 = vpop.f32.mrf.mxu0
    %v426 = vadd.f32 %v326, %v425
    %v427 = vpop.f32.mrf.mxu0
    %v428 = vadd.f32 %v326, %v427
    %429 = vdwg.mxu0
    %v430 = vtanh.pop %v408
    %v431 = vtanh.pop %v410
    %v432 = vtanh.pop %v414
    %v433 = vtanh.pop %v416
    %v434 = vtanh.pop %v420
    %v435 = vtanh.pop %v422
    %v436 = vtanh.pop %v426
    %v437 = vtanh.pop %v428
    %v438 = vadd.s32 %v190, 8192
    %v439 = vadd.s32 %v191, 8192
    %v440 = vadd.s32 %v192, 8192
    %v441 = vadd.s32 %v193, 8192
    %v442 = vadd.s32 %v438, %v188
    %v443 = vadd.s32 %v438, %v189
    %v444 = vadd.s32 %v439, %v188
    %v445 = vadd.s32 %v439, %v189
    %v446 = vadd.s32 %v440, %v188
    %v447 = vadd.s32 %v440, %v189
    %v448 = vadd.s32 %v441, %v188
    %v449 = vadd.s32 %v441, %v189
    %v450 = vxor.u32 %v442, %v203
    %v451 = vxor.u32 %v443, %v203
    %v452 = vxor.u32 %v444, %v203
    %v453 = vxor.u32 %v445, %v203
    %v454 = vxor.u32 %v446, %v203
    %v455 = vxor.u32 %v447, %v203
    %v456 = vxor.u32 %v448, %v203
    %v457 = vxor.u32 %v449, %v203
    %v458 = vshrl.u32 %v450, 16
    %v459 = vshrl.u32 %v451, 16
    %v460 = vshrl.u32 %v452, 16
    %v461 = vshrl.u32 %v453, 16
    %v462 = vshrl.u32 %v454, 16
    %v463 = vshrl.u32 %v455, 16
    %v464 = vshrl.u32 %v456, 16
    %v465 = vshrl.u32 %v457, 16
    %v466 = vxor.u32 %v450, %v458
    %v467 = vxor.u32 %v451, %v459
    %v468 = vxor.u32 %v452, %v460
    %v469 = vxor.u32 %v453, %v461
    %v470 = vxor.u32 %v454, %v462
    %v471 = vxor.u32 %v455, %v463
    %v472 = vxor.u32 %v456, %v464
    %v473 = vxor.u32 %v457, %v465
    %v474 = vmul.u32 %v466, 2246822507
    %v475 = vmul.u32 %v467, 2246822507
    %v476 = vmul.u32 %v468, 2246822507
    %v477 = vmul.u32 %v469, 2246822507
    %v478 = vmul.u32 %v470, 2246822507
    %v479 = vmul.u32 %v471, 2246822507
    %v480 = vmul.u32 %v472, 2246822507
    %v481 = vmul.u32 %v473, 2246822507
    %v482 = vshrl.u32 %v474, 13
    %v483 = vshrl.u32 %v475, 13
    %v484 = vshrl.u32 %v476, 13
    %v485 = vshrl.u32 %v477, 13
    %v486 = vshrl.u32 %v478, 13
    %v487 = vshrl.u32 %v479, 13
    %v488 = vshrl.u32 %v480, 13
    %v489 = vshrl.u32 %v481, 13
    %v490 = vxor.u32 %v474, %v482
    %v491 = vxor.u32 %v475, %v483
    %v492 = vxor.u32 %v476, %v484
    %v493 = vxor.u32 %v477, %v485
    %v494 = vxor.u32 %v478, %v486
    %v495 = vxor.u32 %v479, %v487
    %v496 = vxor.u32 %v480, %v488
    %v497 = vxor.u32 %v481, %v489
    %v498 = vmul.u32 %v490, 3266489909
    %v499 = vmul.u32 %v491, 3266489909
    %v500 = vmul.u32 %v492, 3266489909
    %v501 = vmul.u32 %v493, 3266489909
    %v502 = vmul.u32 %v494, 3266489909
    %v503 = vmul.u32 %v495, 3266489909
    %v504 = vmul.u32 %v496, 3266489909
    %v505 = vmul.u32 %v497, 3266489909
    %v506 = vshrl.u32 %v498, 16
    %v507 = vshrl.u32 %v499, 16
    %v508 = vshrl.u32 %v500, 16
    %v509 = vshrl.u32 %v501, 16
    %v510 = vshrl.u32 %v502, 16
    %v511 = vshrl.u32 %v503, 16
    %v512 = vshrl.u32 %v504, 16
    %v513 = vshrl.u32 %v505, 16
    %v514 = vxor.u32 %v498, %v506
    %v515 = vxor.u32 %v499, %v507
    %v516 = vxor.u32 %v500, %v508
    %v517 = vxor.u32 %v501, %v509
    %v518 = vxor.u32 %v502, %v510
    %v519 = vxor.u32 %v503, %v511
    %v520 = vxor.u32 %v504, %v512
    %v521 = vxor.u32 %v505, %v513
    %vm522 = vcmp.ge.u32.totalorder %v514, 2147483648
    %vm523 = vcmp.ge.u32.totalorder %v515, 2147483648
    %vm524 = vcmp.ge.u32.totalorder %v516, 2147483648
    %vm525 = vcmp.ge.u32.totalorder %v517, 2147483648
    %vm526 = vcmp.ge.u32.totalorder %v518, 2147483648
    %vm527 = vcmp.ge.u32.totalorder %v519, 2147483648
    %vm528 = vcmp.ge.u32.totalorder %v520, 2147483648
    %vm529 = vcmp.ge.u32.totalorder %v521, 2147483648
    %v530 = vsel %vm522, 2.0, 0.0
    %v531 = vsel %vm523, 2.0, 0.0
    %v532 = vsel %vm524, 2.0, 0.0
    %v533 = vsel %vm525, 2.0, 0.0
    %v534 = vsel %vm526, 2.0, 0.0
    %v535 = vsel %vm527, 2.0, 0.0
    %v536 = vsel %vm528, 2.0, 0.0
    %v537 = vsel %vm529, 2.0, 0.0
    %v538 = vmul.f32 %v430, %v530
    %v539 = vmul.f32 %v431, %v531
    %v540 = vmul.f32 %v432, %v532
    %v541 = vmul.f32 %v433, %v533
    %v542 = vmul.f32 %v434, %v534
    %v543 = vmul.f32 %v435, %v535
    %v544 = vmul.f32 %v436, %v536
    %v545 = vmul.f32 %v437, %v537
    %v546 = vld [vmem:[%s6] sm:$0x1]
    %v547 = vld [vmem:[#allocation4] sm:$0x1]
    %549 = vset.pattern.permute.xlu0 0
    %550 = vperm.xlu0 %549, %v547
    %v551 = vpop.permute.xlu0 %550
    %v553 = vlaneseq
    %v554 = vshrl.u32 %v553, 7
    %v555 = vsub.s32 0, %v554
    %v556 = vrot.slane %v551, %v555
    %v558 = vsel %vm328, %v546, 0
    %560 = vmatprep.subr.mxu0 0.0
    %561 = vmatpush1.msra.mxu0 0.0
    %562 = vmatprep.subr.mxu0 0.0
    %563 = vmatpush1.msra.mxu0 0.0
    %564 = vmatprep.subr.mxu0 0.0
    %565 = vmatpush1.msra.mxu0 0.0
    %566 = vmatprep.subr.mxu0 0.0
    %567 = vmatpush1.msra.mxu0 0.0
    %568 = vmatprep.subr.mxu0 0.0
    %569 = vmatpush1.msra.mxu0 0.0
    %570 = vmatprep.subr.mxu0 0.0
    %571 = vmatpush1.msra.mxu0 0.0
    %572 = vmatprep.subr.mxu0 0.0
    %573 = vmatpush1.msra.mxu0 0.0
    %574 = vmatprep.subr.mxu0 0.0
    %575 = vmatpush1.msra.mxu0 0.0
    %576 = vmatprep.subr.mxu0 0.0
    %577 = vmatpush1.msra.mxu0 0.0
    %578 = vmatprep.subr.mxu0 0.0
    %579 = vmatpush1.msra.mxu0 0.0
    %580 = vmatprep.subr.mxu0 0.0
    %581 = vmatpush1.msra.mxu0 0.0
    %582 = vmatprep.subr.mxu0 0.0
    %583 = vmatpush1.msra.mxu0 0.0
    %584 = vmatprep.subr.mxu0 %v545
    %585 = vmatpush1.msra.mxu0 %v544
    %586 = vmatprep.subr.mxu0 %v543
    %587 = vmatpush1.msra.mxu0 %v542
    %588 = vmatprep.subr.mxu0 %v541
    %589 = vmatpush1.msra.mxu0 %v540
    %590 = vmatprep.subr.mxu0 %v539
    %591 = vmatpush1.msra.mxu0 %v538
    %592 = vmatprep.subr.mxu0 0.0
    %593 = vmatpush2.msra.mxu0 0.0
    %594 = vmatprep.subr.mxu0 0.0
    %595 = vmatpush2.msra.mxu0 0.0
    %596 = vmatprep.subr.mxu0 0.0
    %597 = vmatpush2.msra.mxu0 0.0
    %598 = vmatprep.subr.mxu0 0.0
    %599 = vmatpush2.msra.mxu0 0.0
    %600 = vmatprep.subr.mxu0 0.0
    %601 = vmatpush2.msra.mxu0 0.0
    %602 = vmatprep.subr.mxu0 0.0
    %603 = vmatpush2.msra.mxu0 0.0
    %604 = vmatprep.subr.mxu0 0.0
    %605 = vmatpush2.msra.mxu0 0.0
    %606 = vmatprep.subr.mxu0 0.0
    %607 = vmatpush2.msra.mxu0 0.0
    %608 = vmatprep.subr.mxu0 0.0
    %609 = vmatpush2.msra.mxu0 0.0
    %610 = vmatprep.subr.mxu0 0.0
    %611 = vmatpush2.msra.mxu0 0.0
    %612 = vmatprep.subr.mxu0 0.0
    %613 = vmatpush2.msra.mxu0 0.0
    %614 = vmatprep.subr.mxu0 0.0
    %615 = vmatpush2.msra.mxu0 0.0
    %616 = vmatprep.subr.mxu0 0.0
    %617 = vmatpush2.msra.mxu0 0.0
    %618 = vmatprep.subr.mxu0 0.0
    %619 = vmatpush2.msra.mxu0 0.0
    %620 = vmatprep.subr.mxu0 0.0
    %621 = vmatpush2.msra.mxu0 0.0
    %622 = vmatprep.subr.mxu0 0.0
    %623 = vmatpush2.msra.mxu0 0.0
    %624 = vmatprep.mubr.f32.mxu0 0.0
    %625 = vmatmul.mubr.f32.gmra.mxu0 %v558
    %v626 = vpop.f32.mrf.mxu0
    %v627 = vadd.f32 %v556, %v626
    %v628 = vpop.f32.mrf.mxu0
    %v629 = vadd.f32 %v556, %v628
    %630 = vdwg.mxu0
    %v633 = vcombine.low %v627, %v629
    %v635 = vunpack.c.l.s4 1966171168
    %v636 = vunpack.c.0.s8 %v635
    %v637 = vlaneseq
    %v638 = vshrl.u32 %v637, 7
    %v639 = vsub.s32 %v636, %v638
    %v640 = vrot.slane %v633, %v639
    %v642 = vunpack.c.l.s4 1966171168
    %v643 = vunpack.c.0.s8 %v642
    %v644 = vlaneseq
    %v645 = vshrl.u32 %v644, 7
    %v646 = vsub.s32 %v643, %v645
    %v647 = vrot.slane %v640, %v646
    %v649 = vlaneseq
    %vm650 = vcmp.ge.s32.totalorder %v649, 0
    %vm651 = vcmp.lt.s32.totalorder %v649, 256
    %vm652 = vmand %vm650, %vm651
    %653 = vst.msk [vmem:[#allocation5] sm:$0x3] %vm652, %v647
    // Predicated region
    $region30: #{tpu_custom_call.1} parent=1 // pred_check
      _
    $region31: #{tpu_custom_call.1} parent=1 // pred_check_branch
      %655 = sbr.rel (0) target = $region33
    $region32: #{tpu_custom_call.1} parent=1 // pred_region
      %s657 = ssub.s32 32, 32
      %658 = vsyncadd [#allocation6], %s657
      %s660 = sshll.u32 [#allocation5], 4
      %s661 = int_to_ptr.vmem [resolvable:$true] %s660
      %663 = dma.vmem_to_hbm [thread:$0]  %s661, 32, %s8, [#allocation6]
    $region33: #{tpu_custom_call.1} parent=1 // pred_fallthru
      _
    // Predicated region
    $region34: #{tpu_custom_call.1} parent=1 // pred_check
      _
    $region35: #{tpu_custom_call.1} parent=1 // pred_check_branch
      %665 = sbr.rel (0) target = $region37
    $region36: #{tpu_custom_call.1} parent=1 // pred_region
      %666 = dma.done [#allocation6], 32
    $region37: #{tpu_custom_call.1} parent=1 // pred_fallthru
      _
    %667 = vsyncpa [#allocation6], 1

</llo_original>
